<compile_context>
chip_gen: v5e
topology: v5e:2x2
jax: 0.10.0
libtpu: 0.0.40
codegen_flags: <defaults>
</compile_context>

<pallas_src>
import numpy as np
import jax
import jax.numpy as jnp
from jax.experimental import pallas as pl
from jax.experimental.pallas import tpu as pltpu


def _round_up(x, m):
    return (x + m - 1) // m * m


def qinn_kernel(x_ref, w1_ref, b1_ref, w2_ref, b2_ref, w3_ref, b3_ref, o_ref):
    # x tile: [BT, Fp] bf16.  Weights (bf16) + biases (f32) are VMEM-resident.
    x = x_ref[...]

    # fc1 + relu (bf16 MXU, f32 accumulate, f32 VPU epilogue)
    h1 = jnp.dot(x, w1_ref[...], preferred_element_type=jnp.float32)
    h1 = jnp.maximum(h1 + b1_ref[...], 0.0)

    # fc2 + relu
    h2 = jnp.dot(h1.astype(jnp.bfloat16), w2_ref[...],
                 preferred_element_type=jnp.float32)
    h2 = jnp.maximum(h2 + b2_ref[...], 0.0)

    # fc3 with the real-FFT (cosine DFT) folded into the weight at init:
    #   y = (h2 @ C) @ W3.T + b3 == h2 @ (C @ W3.T) + b3
    y = jnp.dot(h2.astype(jnp.bfloat16), w3_ref[...],
                preferred_element_type=jnp.float32)
    o_ref[...] = y + b3_ref[...]


@jax.jit
def _qinn_padded(x, w1t, b1, w2t, b2, w3t_eff, b3):
    """Runs the fused kernel on a padded [Bp, Fp] input; returns [Bp, Op] f32."""
    B, F = x.shape
    Fp, Hp = w1t.shape
    Op = w3t_eff.shape[1]

    # Batch tile: >= 8 rows (sublane multiple), up to 512 rows to amortize the
    # ~0.35 us per-grid-step overhead while keeping double-buffered tiles small.
    BT = min(512, _round_up(B, 8))
    Bp = _round_up(B, BT)
    grid = (Bp // BT,)

    # Pad + cast the input (fused with the pallas_call under this jit).
    if B == Bp and F == Fp:
        xp = x.astype(jnp.bfloat16)
    else:
        xp = jnp.zeros((Bp, Fp), jnp.bfloat16).at[:B, :F].set(
            x.astype(jnp.bfloat16))

    def const2(shape):
        return pl.BlockSpec(shape, lambda i: (0, 0))

    in_specs = [
        pl.BlockSpec((BT, Fp), lambda i: (i, 0)),   # x (streamed per tile)
        const2((Fp, Hp)),                           # w1 (resident)
        const2((1, Hp)),                            # b1
        const2((Hp, Hp)),                           # w2
        const2((1, Hp)),                            # b2
        const2((Hp, Op)),                           # w3_eff (DFT folded in)
        const2((1, Op)),                            # b3
    ]
    out_specs = pl.BlockSpec((BT, Op), lambda i: (i, 0))

    # VMEM budget: resident weights + double-buffered x/y tiles (+ margin),
    # capped at v7x's 64 MiB physical VMEM.
    weight_bytes = (Fp * Hp + Hp * Hp + Hp * Op) * 2 + (2 * Hp + Op) * 4
    tile_bytes = 2 * (BT * Fp * 2 + BT * Op * 4)
    vmem_bytes = int(min(64 * 1024 * 1024,
                         max(32 * 1024 * 1024,
                             2 * (weight_bytes + tile_bytes))))

    flops = 2 * Bp * (Fp * Hp + Hp * Hp + Hp * Op)
    bytes_accessed = int(Bp * Fp * 2 + weight_bytes + Bp * Op * 4)

    out = pl.pallas_call(
        qinn_kernel,
        out_shape=jax.ShapeDtypeStruct((Bp, Op), jnp.float32),
        grid=grid,
        in_specs=in_specs,
        out_specs=out_specs,
        compiler_params=pltpu.CompilerParams(
            dimension_semantics=("parallel",),
            vmem_limit_bytes=vmem_bytes),
        cost_estimate=pl.CostEstimate(flops=flops, transcendentals=0,
                                      bytes_accessed=bytes_accessed),
    )(xp, w1t, b1, w2t, b2, w3t_eff, b3)
    return out


def quantum_inspired_forward(x, params):
    """x: [B, input_size] float32. Returns [B, output_size] float32."""
    B = x.shape[0]
    out = _qinn_padded(x, params["w1t"], params["b1"], params["w2t"],
                       params["b2"], params["w3t_eff"], params["b3"])
    return out[:B, :params["out_size"]]


def init_params(key, input_size, hidden_size, output_size):
    """Deterministic nn.Linear-style init (uniform +/- 1/sqrt(fan_in))."""
    ks = jax.random.split(key, 6)

    def linear(kw, kb, fan_in, fan_out):
        bound = 1.0 / np.sqrt(fan_in)
        w = jax.random.uniform(kw, (fan_out, fan_in), jnp.float32, -bound, bound)
        b = jax.random.uniform(kb, (fan_out,), jnp.float32, -bound, bound)
        return w, b

    w1, b1 = linear(ks[0], ks[1], input_size, hidden_size)
    w2, b2 = linear(ks[2], ks[3], hidden_size, hidden_size)
    w3, b3 = linear(ks[4], ks[5], hidden_size, output_size)

    # Cosine DFT matrix: real(fft(v))[k] = sum_n v[n] * cos(2*pi*n*k/H).
    n = np.arange(hidden_size)
    cos_dft = np.cos(2.0 * np.pi * np.outer(n, n) / hidden_size).astype(np.float32)

    # Fold the DFT into fc3 (both linear, no nonlinearity in between) in f32.
    w3t_eff = jnp.asarray(cos_dft) @ jnp.asarray(w3).T   # [H, OUT], f32

    # Pad all feature dims to multiples of 128 (lane-dense, full MXU tiles).
    Fp = _round_up(input_size, 128)
    Hp = _round_up(hidden_size, 128)
    Op = _round_up(output_size, 128)

    def pad2(a, rows, cols, dtype):
        buf = jnp.zeros((rows, cols), dtype)
        return buf.at[:a.shape[0], :a.shape[1]].set(a.astype(dtype))

    return {
        "w1t": pad2(jnp.asarray(w1).T, Fp, Hp, jnp.bfloat16),
        "b1": pad2(jnp.asarray(b1)[None, :], 1, Hp, jnp.float32),
        "w2t": pad2(jnp.asarray(w2).T, Hp, Hp, jnp.bfloat16),
        "b2": pad2(jnp.asarray(b2)[None, :], 1, Hp, jnp.float32),
        "w3t_eff": pad2(w3t_eff, Hp, Op, jnp.bfloat16),
        "b3": pad2(jnp.asarray(b3)[None, :], 1, Op, jnp.float32),
        "out_size": output_size,
        # Unpadded f32 originals, used only by the pure-JAX reference.
        "ref": {
            "w1t": jnp.asarray(w1).T, "b1": jnp.asarray(b1)[None, :],
            "w2t": jnp.asarray(w2).T, "b2": jnp.asarray(b2)[None, :],
            "w3t": jnp.asarray(w3).T, "b3": jnp.asarray(b3)[None, :],
        },
    }


def reference_forward(x, params):
    """Pure-JAX f32 reference matching the PyTorch module exactly."""
    p = params["ref"]
    h1 = jnp.maximum(x @ p["w1t"] + p["b1"], 0.0)
    h2 = jnp.maximum(h1 @ p["w2t"] + p["b2"], 0.0)
    q = jnp.fft.fft(h2, axis=-1).real.astype(jnp.float32)
    return q @ p["w3t"] + p["b3"]


if __name__ == "__main__":
    B, INPUT, HIDDEN, OUTPUT = 2, 16, 32, 8

    key = jax.random.PRNGKey(0)
    kx, kp = jax.random.split(key)
    x = jax.random.normal(kx, (B, INPUT), jnp.float32)
    params = init_params(kp, INPUT, HIDDEN, OUTPUT)

    out = quantum_inspired_forward(x, params)
    out = jax.block_until_ready(out)

    ref = reference_forward(x, params)
    # Tolerance loosened relative to the f32 reference because weights run
    # through the MXU in bfloat16 (f32 accumulation).
    np.testing.assert_allclose(np.asarray(out), np.asarray(ref),
                               rtol=3e-2, atol=3e-2)
    print("KERNEL_OK")
</pallas_src>

<mosaic_0001>
module attributes {stable_mosaic.version = 11 : i64} {
  func.func @qinn_kernel(%arg0: i32, %arg1: memref<8x128xbf16, #tpu.memory_space<vmem>>, %arg2: memref<128x128xbf16, #tpu.memory_space<vmem>>, %arg3: memref<1x128xf32, #tpu.memory_space<vmem>>, %arg4: memref<128x128xbf16, #tpu.memory_space<vmem>>, %arg5: memref<1x128xf32, #tpu.memory_space<vmem>>, %arg6: memref<128x128xbf16, #tpu.memory_space<vmem>>, %arg7: memref<1x128xf32, #tpu.memory_space<vmem>>, %arg8: memref<8x128xf32, #tpu.memory_space<vmem>>) attributes {dimension_semantics = [#tpu.dimension_semantics<parallel>], iteration_bounds = array<i64: 1>, scalar_prefetch = 0 : i64, scratch_operands = 0 : i64, tpu.core_type = #tpu.core_type<tc>, window_params = [{transform_indices = @transform_0, window_bounds = array<i64: 8, 128>}, {pipeline_mode = #tpu.pipeline_mode<synchronous>, transform_indices = @transform_1, window_bounds = array<i64: 128, 128>}, {pipeline_mode = #tpu.pipeline_mode<synchronous>, transform_indices = @transform_2, window_bounds = array<i64: 1, 128>}, {pipeline_mode = #tpu.pipeline_mode<synchronous>, transform_indices = @transform_3, window_bounds = array<i64: 128, 128>}, {pipeline_mode = #tpu.pipeline_mode<synchronous>, transform_indices = @transform_4, window_bounds = array<i64: 1, 128>}, {pipeline_mode = #tpu.pipeline_mode<synchronous>, transform_indices = @transform_5, window_bounds = array<i64: 128, 128>}, {pipeline_mode = #tpu.pipeline_mode<synchronous>, transform_indices = @transform_6, window_bounds = array<i64: 1, 128>}, {transform_indices = @transform_7, window_bounds = array<i64: 8, 128>}]} {
    %c0 = arith.constant 0 : index
    %c0_0 = arith.constant 0 : index
    %0 = vector.load %arg1[%c0, %c0_0] : memref<8x128xbf16, #tpu.memory_space<vmem>>, vector<8x128xbf16>
    %c0_1 = arith.constant 0 : index
    %c0_2 = arith.constant 0 : index
    %1 = vector.load %arg2[%c0_1, %c0_2] : memref<128x128xbf16, #tpu.memory_space<vmem>>, vector<128x128xbf16>
    %cst = arith.constant dense<0.000000e+00> : vector<8x128xf32>
    %2 = tpu.matmul %0, %1, %cst {dimension_numbers = #tpu.dot_dimension_numbers<[1], [0], [0], [1], [0, 0, 1, 1], [], []>} : vector<8x128xbf16>, vector<128x128xbf16>, vector<8x128xf32> -> vector<8x128xf32>
    %c0_3 = arith.constant 0 : index
    %c0_4 = arith.constant 0 : index
    %3 = vector.load %arg3[%c0_3, %c0_4] : memref<1x128xf32, #tpu.memory_space<vmem>>, vector<1x128xf32>
    %4 = vector.broadcast %3 : vector<1x128xf32> to vector<8x128xf32>
    %5 = arith.addf %2, %4 : vector<8x128xf32>
    %cst_5 = arith.constant 0.000000e+00 : f32
    %6 = vector.broadcast %cst_5 : f32 to vector<8x128xf32>
    %7 = arith.maximumf %5, %6 : vector<8x128xf32>
    %8 = arith.truncf %7 : vector<8x128xf32> to vector<8x128xbf16>
    %c0_6 = arith.constant 0 : index
    %c0_7 = arith.constant 0 : index
    %9 = vector.load %arg4[%c0_6, %c0_7] : memref<128x128xbf16, #tpu.memory_space<vmem>>, vector<128x128xbf16>
    %cst_8 = arith.constant dense<0.000000e+00> : vector<8x128xf32>
    %10 = tpu.matmul %8, %9, %cst_8 {dimension_numbers = #tpu.dot_dimension_numbers<[1], [0], [0], [1], [0, 0, 1, 1], [], []>} : vector<8x128xbf16>, vector<128x128xbf16>, vector<8x128xf32> -> vector<8x128xf32>
    %c0_9 = arith.constant 0 : index
    %c0_10 = arith.constant 0 : index
    %11 = vector.load %arg5[%c0_9, %c0_10] : memref<1x128xf32, #tpu.memory_space<vmem>>, vector<1x128xf32>
    %12 = vector.broadcast %11 : vector<1x128xf32> to vector<8x128xf32>
    %13 = arith.addf %10, %12 : vector<8x128xf32>
    %cst_11 = arith.constant 0.000000e+00 : f32
    %14 = vector.broadcast %cst_11 : f32 to vector<8x128xf32>
    %15 = arith.maximumf %13, %14 : vector<8x128xf32>
    %16 = arith.truncf %15 : vector<8x128xf32> to vector<8x128xbf16>
    %c0_12 = arith.constant 0 : index
    %c0_13 = arith.constant 0 : index
    %17 = vector.load %arg6[%c0_12, %c0_13] : memref<128x128xbf16, #tpu.memory_space<vmem>>, vector<128x128xbf16>
    %cst_14 = arith.constant dense<0.000000e+00> : vector<8x128xf32>
    %18 = tpu.matmul %16, %17, %cst_14 {dimension_numbers = #tpu.dot_dimension_numbers<[1], [0], [0], [1], [0, 0, 1, 1], [], []>} : vector<8x128xbf16>, vector<128x128xbf16>, vector<8x128xf32> -> vector<8x128xf32>
    %c0_15 = arith.constant 0 : index
    %c0_16 = arith.constant 0 : index
    %19 = vector.load %arg7[%c0_15, %c0_16] : memref<1x128xf32, #tpu.memory_space<vmem>>, vector<1x128xf32>
    %20 = vector.broadcast %19 : vector<1x128xf32> to vector<8x128xf32>
    %21 = arith.addf %18, %20 : vector<8x128xf32>
    %c0_17 = arith.constant 0 : index
    %c0_18 = arith.constant 0 : index
    %22 = vector.load %arg8[%c0_17, %c0_18] : memref<8x128xf32, #tpu.memory_space<vmem>>, vector<8x128xf32>
    tpu.vector_store %arg8[%c0_17, %c0_18], %21 {strides = array<i32>} : memref<8x128xf32, #tpu.memory_space<vmem>>, vector<8x128xf32>,
    return
  }
  func.func @transform_0(%arg0: i32) -> (i32, i32) {
    %c0_i32 = arith.constant 0 : i32
    %c0_i32_0 = arith.constant 0 : i32
    return %arg0, %c0_i32 : i32, i32
  }
  func.func @transform_1(%arg0: i32) -> (i32, i32) {
    %c0_i32 = arith.constant 0 : i32
    %c0_i32_0 = arith.constant 0 : i32
    %c0_i32_1 = arith.constant 0 : i32
    return %c0_i32, %c0_i32_0 : i32, i32
  }
  func.func @transform_2(%arg0: i32) -> (i32, i32) {
    %c0_i32 = arith.constant 0 : i32
    %c0_i32_0 = arith.constant 0 : i32
    %c0_i32_1 = arith.constant 0 : i32
    return %c0_i32, %c0_i32_0 : i32, i32
  }
  func.func @transform_3(%arg0: i32) -> (i32, i32) {
    %c0_i32 = arith.constant 0 : i32
    %c0_i32_0 = arith.constant 0 : i32
    %c0_i32_1 = arith.constant 0 : i32
    return %c0_i32, %c0_i32_0 : i32, i32
  }
  func.func @transform_4(%arg0: i32) -> (i32, i32) {
    %c0_i32 = arith.constant 0 : i32
    %c0_i32_0 = arith.constant 0 : i32
    %c0_i32_1 = arith.constant 0 : i32
    return %c0_i32, %c0_i32_0 : i32, i32
  }
  func.func @transform_5(%arg0: i32) -> (i32, i32) {
    %c0_i32 = arith.constant 0 : i32
    %c0_i32_0 = arith.constant 0 : i32
    %c0_i32_1 = arith.constant 0 : i32
    return %c0_i32, %c0_i32_0 : i32, i32
  }
  func.func @transform_6(%arg0: i32) -> (i32, i32) {
    %c0_i32 = arith.constant 0 : i32
    %c0_i32_0 = arith.constant 0 : i32
    %c0_i32_1 = arith.constant 0 : i32
    return %c0_i32, %c0_i32_0 : i32, i32
  }
  func.func @transform_7(%arg0: i32) -> (i32, i32) {
    %c0_i32 = arith.constant 0 : i32
    %c0_i32_0 = arith.constant 0 : i32
    return %arg0, %c0_i32 : i32, i32
  }
}

</mosaic_0001>

<llo_original>
// kernel: _qinn_padded.1
$region0: #{_qinn_padded.1}
  #allocation0 [shape = 'u32[]', space=smem, size = 0x4, offset = 0x4, fixed_abs, tag = 'smem constant byte address 0x4 - core index']
  #allocation1 [shape = 'u32[72,128]{1,0:T(1,128)}', space=vmem, size = 0x9000, scoped, tag = 'internal scratch']
  %s0 = inlined_call_operand.vmem [shape: bf16[8,128], index: 0, kind: input, shape index: {}]
  %s1 = inlined_call_operand.hbm [shape: bf16[128,128], index: 1, kind: input, shape index: {}]
  %s2 = inlined_call_operand.vmem [shape: f32[1,128], index: 2, kind: input, shape index: {}]
  %s3 = inlined_call_operand.hbm [shape: bf16[128,128], index: 3, kind: input, shape index: {}]
  %s4 = inlined_call_operand.vmem [shape: f32[1,128], index: 4, kind: input, shape index: {}]
  %s5 = inlined_call_operand.hbm [shape: bf16[128,128], index: 5, kind: input, shape index: {}]
  %s6 = inlined_call_operand.vmem [shape: f32[1,128], index: 6, kind: input, shape index: {}]
  %s7 = inlined_call_operand.hbm [shape: f32[8,128], index: 7, kind: output, shape index: {}]
  %s8 = sld [smem:[#allocation0]]
  $region50: #{_qinn_padded.1} parent=0
    _
  %s10 = ssub.s32 1, %s8
  %s11 = scalar_select 0, %s10, %s8
  $region1: #{_qinn_padded.1} parent=0
    #allocation2 [shape = 'u8[32768]{0}', space=vmem, size = 0x8000, scoped, tag = 'input window, operand 1, single buffered']
    #allocation3 [shape = 's32[1]{0}', space=sflag, size = 0x4, scoped, tag = 'scoped memory for _qinn_padded.1']
    #allocation4 [shape = 's32[1]{0}', space=sflag, size = 0x4, scoped, tag = 'scoped memory for _qinn_padded.1']
    #allocation5 [shape = 'u8[32768]{0}', space=vmem, size = 0x8000, scoped, tag = 'input window, operand 3, single buffered']
    #allocation6 [shape = 's32[1]{0}', space=sflag, size = 0x4, scoped, tag = 'scoped memory for _qinn_padded.1']
    #allocation7 [shape = 'u8[32768]{0}', space=vmem, size = 0x8000, scoped, tag = 'input window, operand 5, single buffered']
    #allocation8 [shape = 'u8[4096]{0}', space=vmem, size = 0x1000, scoped, tag = 'output window, operand 0, single buffered']
    %12 = vsyncpa [#allocation3], 0
    %13 = vsyncpa [#allocation6], 0
    %14 = vsyncpa [#allocation4], 0
    // Predicated region
    $region2: #{_qinn_padded.1} parent=1 // pred_check
      _
    $region3: #{_qinn_padded.1} parent=1 // pred_check_branch
      %16 = sbr.rel (0) target = $region5
    $region4: #{_qinn_padded.1} parent=1 // pred_region
      _
    $region5: #{_qinn_padded.1} parent=1 // pred_fallthru
      _
    // Predicated region
    $region6: #{_qinn_padded.1} parent=1 // pred_check
      _
    $region7: #{_qinn_padded.1} parent=1 // pred_check_branch
      %18 = sbr.rel (0) target = $region9
    $region8: #{_qinn_padded.1} parent=1 // pred_region
      %20 = vsyncadd [#allocation3], 0
      %s21 = sshll.u32 %s1, 4
      %s22 = int_to_ptr.hbm [resolvable:$true] %s21
      %s23 = sshll.u32 [#allocation2], 4
      %s24 = int_to_ptr.vmem [resolvable:$true] %s23
      %29 = dma.hbm_to_vmem [thread:$0]  %s22, 1024, %s24, [#allocation3], 64, 64, 4
    $region9: #{_qinn_padded.1} parent=1 // pred_fallthru
      _
    // Predicated region
    $region10: #{_qinn_padded.1} parent=1 // pred_check
      _
    $region11: #{_qinn_padded.1} parent=1 // pred_check_branch
      %31 = sbr.rel (0) target = $region13
    $region12: #{_qinn_padded.1} parent=1 // pred_region
      _
    $region13: #{_qinn_padded.1} parent=1 // pred_fallthru
      _
    // Predicated region
    $region14: #{_qinn_padded.1} parent=1 // pred_check
      _
    $region15: #{_qinn_padded.1} parent=1 // pred_check_branch
      %33 = sbr.rel (0) target = $region17
    $region16: #{_qinn_padded.1} parent=1 // pred_region
      %35 = vsyncadd [#allocation6], 0
      %s36 = sshll.u32 %s3, 4
      %s37 = int_to_ptr.hbm [resolvable:$true] %s36
      %s38 = sshll.u32 [#allocation5], 4
      %s39 = int_to_ptr.vmem [resolvable:$true] %s38
      %44 = dma.hbm_to_vmem [thread:$0]  %s37, 1024, %s39, [#allocation6], 64, 64, 4
    $region17: #{_qinn_padded.1} parent=1 // pred_fallthru
      _
    // Predicated region
    $region18: #{_qinn_padded.1} parent=1 // pred_check
      _
    $region19: #{_qinn_padded.1} parent=1 // pred_check_branch
      %46 = sbr.rel (0) target = $region21
    $region20: #{_qinn_padded.1} parent=1 // pred_region
      _
    $region21: #{_qinn_padded.1} parent=1 // pred_fallthru
      _
    // Predicated region
    $region22: #{_qinn_padded.1} parent=1 // pred_check
      _
    $region23: #{_qinn_padded.1} parent=1 // pred_check_branch
      %48 = sbr.rel (0) target = $region25
    $region24: #{_qinn_padded.1} parent=1 // pred_region
      %50 = vsyncadd [#allocation6], 0
      %s51 = sshll.u32 %s5, 4
      %s52 = int_to_ptr.hbm [resolvable:$true] %s51
      %s53 = sshll.u32 [#allocation7], 4
      %s54 = int_to_ptr.vmem [resolvable:$true] %s53
      %59 = dma.hbm_to_vmem [thread:$0]  %s52, 1024, %s54, [#allocation6], 64, 64, 4
    $region25: #{_qinn_padded.1} parent=1 // pred_fallthru
      _
    // Predicated region
    $region26: #{_qinn_padded.1} parent=1 // pred_check
      _
    $region27: #{_qinn_padded.1} parent=1 // pred_check_branch
      %61 = sbr.rel (0) target = $region29
    $region28: #{_qinn_padded.1} parent=1 // pred_region
      _
    $region29: #{_qinn_padded.1} parent=1 // pred_fallthru
      _
    // Predicated region
    $region30: #{_qinn_padded.1} parent=1 // pred_check
      _
    $region31: #{_qinn_padded.1} parent=1 // pred_check_branch
      %63 = sbr.rel (0) target = $region33
    $region32: #{_qinn_padded.1} parent=1 // pred_region
      %65 = dma.done [#allocation3], 1024
    $region33: #{_qinn_padded.1} parent=1 // pred_fallthru
      _
    // Predicated region
    $region34: #{_qinn_padded.1} parent=1 // pred_check
      _
    $region35: #{_qinn_padded.1} parent=1 // pred_check_branch
      %67 = sbr.rel (0) target = $region37
    $region36: #{_qinn_padded.1} parent=1 // pred_region
      %69 = dma.done [#allocation6], 1024
    $region37: #{_qinn_padded.1} parent=1 // pred_fallthru
      _
    // Predicated region
    $region38: #{_qinn_padded.1} parent=1 // pred_check
      _
    $region39: #{_qinn_padded.1} parent=1 // pred_check_branch
      %71 = sbr.rel (0) target = $region41
    $region40: #{_qinn_padded.1} parent=1 // pred_region
      %73 = dma.done [#allocation6], 1024
    $region41: #{_qinn_padded.1} parent=1 // pred_fallthru
      _
    %v74 = vld [vmem:[%s0] sm:$0xf]
    %v75 = vld [vmem:[#allocation2] sm:$0xf]
    %v76 = vld [vmem:[#allocation2 + $0x4] sm:$0xf]
    %v77 = vld [vmem:[#allocation2 + $0x8] sm:$0xf]
    %v78 = vld [vmem:[#allocation2 + $0xc] sm:$0xf]
    %v79 = vld [vmem:[#allocation2 + $0x10] sm:$0xf]
    %v80 = vld [vmem:[#allocation2 + $0x14] sm:$0xf]
    %v81 = vld [vmem:[#allocation2 + $0x18] sm:$0xf]
    %v82 = vld [vmem:[#allocation2 + $0x1c] sm:$0xf]
    %v83 = vld [vmem:[#allocation2 + $0x20] sm:$0xf]
    %v84 = vld [vmem:[#allocation2 + $0x24] sm:$0xf]
    %v85 = vld [vmem:[#allocation2 + $0x28] sm:$0xf]
    %v86 = vld [vmem:[#allocation2 + $0x2c] sm:$0xf]
    %v87 = vld [vmem:[#allocation2 + $0x30] sm:$0xf]
    %v88 = vld [vmem:[#allocation2 + $0x34] sm:$0xf]
    %v89 = vld [vmem:[#allocation2 + $0x38] sm:$0xf]
    %v90 = vld [vmem:[#allocation2 + $0x3c] sm:$0xf]
    %v91 = vld [vmem:[%s2] sm:$0x1]
    %v93 = vperm.slane %v91, 0
    %v111 = vunpack.c.l.b16 %v75
    %v112 = vunpack.c.l.b16 %v76
    %v113 = vunpack.c.l.b16 %v77
    %v114 = vunpack.c.l.b16 %v78
    %v115 = vunpack.c.l.b16 %v79
    %v116 = vunpack.c.l.b16 %v80
    %v117 = vunpack.c.l.b16 %v81
    %v118 = vunpack.c.l.b16 %v82
    %v119 = vunpack.c.l.b16 %v83
    %v120 = vunpack.c.l.b16 %v84
    %v121 = vunpack.c.l.b16 %v85
    %v122 = vunpack.c.l.b16 %v86
    %v123 = vunpack.c.l.b16 %v87
    %v124 = vunpack.c.l.b16 %v88
    %v125 = vunpack.c.l.b16 %v89
    %v126 = vunpack.c.l.b16 %v90
    %v127 = vpack.c.b16 %v112, %v111
    %v128 = vpack.c.b16 %v114, %v113
    %v129 = vpack.c.b16 %v116, %v115
    %v130 = vpack.c.b16 %v118, %v117
    %v131 = vpack.c.b16 %v120, %v119
    %v132 = vpack.c.b16 %v122, %v121
    %v133 = vpack.c.b16 %v124, %v123
    %v134 = vpack.c.b16 %v126, %v125
    %143 = vmatpush.bf16.msra.mxu0 %v134
    %144 = vmatpush.bf16.msra.mxu0 %v133
    %145 = vmatpush.bf16.msra.mxu0 %v132
    %146 = vmatpush.bf16.msra.mxu0 %v131
    %147 = vmatpush.bf16.msra.mxu0 %v130
    %148 = vmatpush.bf16.msra.mxu0 %v129
    %149 = vmatpush.bf16.msra.mxu0 %v128
    %150 = vmatpush.bf16.msra.mxu0 %v127
    %151 = vmatmul.bf16.gmra.mxu0 %v74
    %v152 = vpop.f32.mrf.mxu0
    %v153 = vadd.f32 %v93, %v152
    %v154 = vpop.f32.mrf.mxu0
    %155 = vdwg.mxu0
    %v156 = vmax.f32 %v153, 0.0
    %v157 = vpack.c.bf16 %v156, %v156
    %v158 = vld [vmem:[#allocation5] sm:$0xf]
    %v159 = vld [vmem:[#allocation5 + $0x4] sm:$0xf]
    %v160 = vld [vmem:[#allocation5 + $0x8] sm:$0xf]
    %v161 = vld [vmem:[#allocation5 + $0xc] sm:$0xf]
    %v162 = vld [vmem:[#allocation5 + $0x10] sm:$0xf]
    %v163 = vld [vmem:[#allocation5 + $0x14] sm:$0xf]
    %v164 = vld [vmem:[#allocation5 + $0x18] sm:$0xf]
    %v165 = vld [vmem:[#allocation5 + $0x1c] sm:$0xf]
    %v166 = vld [vmem:[#allocation5 + $0x20] sm:$0xf]
    %v167 = vld [vmem:[#allocation5 + $0x24] sm:$0xf]
    %v168 = vld [vmem:[#allocation5 + $0x28] sm:$0xf]
    %v169 = vld [vmem:[#allocation5 + $0x2c] sm:$0xf]
    %v170 = vld [vmem:[#allocation5 + $0x30] sm:$0xf]
    %v171 = vld [vmem:[#allocation5 + $0x34] sm:$0xf]
    %v172 = vld [vmem:[#allocation5 + $0x38] sm:$0xf]
    %v173 = vld [vmem:[#allocation5 + $0x3c] sm:$0xf]
    %v174 = vld [vmem:[%s4] sm:$0x1]
    %v176 = vperm.slane %v174, 0
    %v194 = vunpack.c.l.b16 %v158
    %v195 = vunpack.c.l.b16 %v159
    %v196 = vunpack.c.l.b16 %v160
    %v197 = vunpack.c.l.b16 %v161
    %v198 = vunpack.c.l.b16 %v162
    %v199 = vunpack.c.l.b16 %v163
    %v200 = vunpack.c.l.b16 %v164
    %v201 = vunpack.c.l.b16 %v165
    %v202 = vunpack.c.l.b16 %v166
    %v203 = vunpack.c.l.b16 %v167
    %v204 = vunpack.c.l.b16 %v168
    %v205 = vunpack.c.l.b16 %v169
    %v206 = vunpack.c.l.b16 %v170
    %v207 = vunpack.c.l.b16 %v171
    %v208 = vunpack.c.l.b16 %v172
    %v209 = vunpack.c.l.b16 %v173
    %v210 = vpack.c.b16 %v195, %v194
    %v211 = vpack.c.b16 %v197, %v196
    %v212 = vpack.c.b16 %v199, %v198
    %v213 = vpack.c.b16 %v201, %v200
    %v214 = vpack.c.b16 %v203, %v202
    %v215 = vpack.c.b16 %v205, %v204
    %v216 = vpack.c.b16 %v207, %v206
    %v217 = vpack.c.b16 %v209, %v208
    %226 = vmatpush.bf16.msra.mxu0 %v217
    %227 = vmatpush.bf16.msra.mxu0 %v216
    %228 = vmatpush.bf16.msra.mxu0 %v215
    %229 = vmatpush.bf16.msra.mxu0 %v214
    %230 = vmatpush.bf16.msra.mxu0 %v213
    %231 = vmatpush.bf16.msra.mxu0 %v212
    %232 = vmatpush.bf16.msra.mxu0 %v211
    %233 = vmatpush.bf16.msra.mxu0 %v210
    %234 = vmatmul.bf16.gmra.mxu0 %v157
    %v235 = vpop.f32.mrf.mxu0
    %v236 = vadd.f32 %v176, %v235
    %v237 = vpop.f32.mrf.mxu0
    %238 = vdwg.mxu0
    %v239 = vmax.f32 %v236, 0.0
    %v240 = vpack.c.bf16 %v239, %v239
    %v241 = vld [vmem:[#allocation7] sm:$0xf]
    %v242 = vld [vmem:[#allocation7 + $0x4] sm:$0xf]
    %v243 = vld [vmem:[#allocation7 + $0x8] sm:$0xf]
    %v244 = vld [vmem:[#allocation7 + $0xc] sm:$0xf]
    %v245 = vld [vmem:[#allocation7 + $0x10] sm:$0xf]
    %v246 = vld [vmem:[#allocation7 + $0x14] sm:$0xf]
    %v247 = vld [vmem:[#allocation7 + $0x18] sm:$0xf]
    %v248 = vld [vmem:[#allocation7 + $0x1c] sm:$0xf]
    %v249 = vld [vmem:[#allocation7 + $0x20] sm:$0xf]
    %v250 = vld [vmem:[#allocation7 + $0x24] sm:$0xf]
    %v251 = vld [vmem:[#allocation7 + $0x28] sm:$0xf]
    %v252 = vld [vmem:[#allocation7 + $0x2c] sm:$0xf]
    %v253 = vld [vmem:[#allocation7 + $0x30] sm:$0xf]
    %v254 = vld [vmem:[#allocation7 + $0x34] sm:$0xf]
    %v255 = vld [vmem:[#allocation7 + $0x38] sm:$0xf]
    %v256 = vld [vmem:[#allocation7 + $0x3c] sm:$0xf]
    %v257 = vld [vmem:[%s6] sm:$0x1]
    %v259 = vperm.slane %v257, 0
    %v277 = vunpack.c.l.b16 %v241
    %v278 = vunpack.c.l.b16 %v242
    %v279 = vunpack.c.l.b16 %v243
    %v280 = vunpack.c.l.b16 %v244
    %v281 = vunpack.c.l.b16 %v245
    %v282 = vunpack.c.l.b16 %v246
    %v283 = vunpack.c.l.b16 %v247
    %v284 = vunpack.c.l.b16 %v248
    %v285 = vunpack.c.l.b16 %v249
    %v286 = vunpack.c.l.b16 %v250
    %v287 = vunpack.c.l.b16 %v251
    %v288 = vunpack.c.l.b16 %v252
    %v289 = vunpack.c.l.b16 %v253
    %v290 = vunpack.c.l.b16 %v254
    %v291 = vunpack.c.l.b16 %v255
    %v292 = vunpack.c.l.b16 %v256
    %v293 = vpack.c.b16 %v278, %v277
    %v294 = vpack.c.b16 %v280, %v279
    %v295 = vpack.c.b16 %v282, %v281
    %v296 = vpack.c.b16 %v284, %v283
    %v297 = vpack.c.b16 %v286, %v285
    %v298 = vpack.c.b16 %v288, %v287
    %v299 = vpack.c.b16 %v290, %v289
    %v300 = vpack.c.b16 %v292, %v291
    %309 = vmatpush.bf16.msra.mxu0 %v300
    %310 = vmatpush.bf16.msra.mxu0 %v299
    %311 = vmatpush.bf16.msra.mxu0 %v298
    %312 = vmatpush.bf16.msra.mxu0 %v297
    %313 = vmatpush.bf16.msra.mxu0 %v296
    %314 = vmatpush.bf16.msra.mxu0 %v295
    %315 = vmatpush.bf16.msra.mxu0 %v294
    %316 = vmatpush.bf16.msra.mxu0 %v293
    %317 = vmatmul.bf16.gmra.mxu0 %v240
    %v318 = vpop.f32.mrf.mxu0
    %v319 = vadd.f32 %v259, %v318
    %v320 = vpop.f32.mrf.mxu0
    %321 = vdwg.mxu0
    %322 = vst [vmem:[#allocation8] sm:$0xff] %v319
    // Predicated region
    $region42: #{_qinn_padded.1} parent=1 // pred_check
      _
    $region43: #{_qinn_padded.1} parent=1 // pred_check_branch
      %324 = sbr.rel (0) target = $region45
    $region44: #{_qinn_padded.1} parent=1 // pred_region
      %326 = vsyncadd [#allocation4], 0
      %s328 = sshll.u32 [#allocation8], 4
      %s329 = int_to_ptr.vmem [resolvable:$true] %s328
      %s330 = sshll.u32 %s7, 4
      %s331 = int_to_ptr.hbm [resolvable:$true] %s330
      %333 = dma.vmem_to_hbm [thread:$0]  %s329, 128, %s331, [#allocation4]
    $region45: #{_qinn_padded.1} parent=1 // pred_fallthru
      _
    // Predicated region
    $region46: #{_qinn_padded.1} parent=1 // pred_check
      _
    $region47: #{_qinn_padded.1} parent=1 // pred_check_branch
      %335 = sbr.rel (0) target = $region49
    $region48: #{_qinn_padded.1} parent=1 // pred_region
      %337 = dma.done [#allocation4], 128
    $region49: #{_qinn_padded.1} parent=1 // pred_fallthru
      _
    %338 = vsyncpa [#allocation3], 1
    %339 = vsyncpa [#allocation6], 1
    %340 = vsyncpa [#allocation4], 1

</llo_original>
